<compile_context>
chip_gen: v6e
topology: v6e:2x2x1
jax: 0.10.0
libtpu: 0.0.40
codegen_flags: <defaults>
</compile_context>

<pallas_src>
from functools import partial
from typing import NamedTuple

import numpy as np
import jax
import jax.numpy as jnp
from jax.experimental import pallas as pl
from jax.experimental.pallas import tpu as pltpu

EPS = 1e-5
_LANES = 128  # packed-parameter slab lane width (one f32 lane-tile)


class _BlockCfg(NamedTuple):
    """Static layout info for the packed-parameter slab (hashable -> jit-static)."""
    c0: int
    c1: int
    c2: int
    k1: int
    k2: int
    t2: int
    dout: int
    off_w1: int
    off_w2: int
    off_wl: int
    off_pp: int


def _round_up8(x: int) -> int:
    return (x + 7) // 8 * 8


def _conv1d_block_kernel(x_ref, wp_ref, out_ref, *, cfg: _BlockCfg):
    """Fused (conv1d -> relu -> batchnorm) x2 -> flatten -> linear.

    x_ref  : (N, T0, C0)      channels-last input
    wp_ref : (rows, 128)      packed parameters (sublane-aligned sections):
                rows [off_w1 : off_w1+K1*C0), lanes [:C1)  = layer-1 conv weight (im2col)
                rows [off_w2 : off_w2+K2*C1), lanes [:C2)  = layer-2 conv weight (im2col)
                rows [off_wl : off_wl+T2*C2), lanes [:Dout)= linear weight ((T,C)-flatten rows)
                rows [off_pp : off_pp+7)                   = b1,g1,be1,b2,g2,be2,bl
    out_ref: (N, Dout)
    """
    c0, c1, c2 = cfg.c0, cfg.c1, cfg.c2
    k1, k2, t2, dout = cfg.k1, cfg.k2, cfg.t2, cfg.dout

    x = x_ref[...]                                               # (N, T0, C0)

    # Static slices of the packed slab (row offsets are multiples of 8 -> aligned).
    w1 = wp_ref[cfg.off_w1:cfg.off_w1 + k1 * c0, :c1]            # (K1*C0, C1)
    w2 = wp_ref[cfg.off_w2:cfg.off_w2 + k2 * c1, :c2]            # (K2*C1, C2)
    wl = wp_ref[cfg.off_wl:cfg.off_wl + t2 * c2, :dout]          # (T2*C2, Dout)
    pp = cfg.off_pp

    def conv_relu_bn(h, w, bias, gamma, beta, k_sz):
        n, t, _ = h.shape
        t_out = t - k_sz + 1
        # im2col: stack the K shifted views along the channel (lane) axis and
        # contract K*Cin in a single MXU matmul (one push per layer).
        win = jnp.concatenate([h[:, k:k + t_out, :] for k in range(k_sz)],
                              axis=-1)                           # (N, T_out, K*Cin)
        acc = jax.lax.dot_general(
            win, w,
            dimension_numbers=(((2,), (0,)), ((), ())),
            preferred_element_type=jnp.float32)                  # (N, T_out, Cout)
        acc = jnp.maximum(acc + bias, 0.0)                       # conv bias + ReLU

        # BatchNorm1d (training-mode stats), single data pass:
        # E[x], E[x^2] via sums scaled by a precomputed constant; rsqrt on EUP.
        inv_cnt = 1.0 / float(n * t_out)
        mean = jnp.sum(jnp.sum(acc, axis=0), axis=0, keepdims=True) * inv_cnt
        ex2 = jnp.sum(jnp.sum(acc * acc, axis=0), axis=0, keepdims=True) * inv_cnt
        var = ex2 - mean * mean
        return (acc - mean) * jax.lax.rsqrt(var + EPS) * gamma + beta

    h = conv_relu_bn(x, w1,
                     wp_ref[pp + 0:pp + 1, :c1],
                     wp_ref[pp + 1:pp + 2, :c1],
                     wp_ref[pp + 2:pp + 3, :c1], k1)
    h = conv_relu_bn(h, w2,
                     wp_ref[pp + 3:pp + 4, :c2],
                     wp_ref[pp + 4:pp + 5, :c2],
                     wp_ref[pp + 5:pp + 6, :c2], k2)

    # Flatten in (T, C) order (linear weight rows were permuted to match) + Linear.
    flat = h.reshape(h.shape[0], -1)                             # (N, T2*C2)
    y = jnp.dot(flat, wl, preferred_element_type=jnp.float32)    # (N, Dout)
    out_ref[...] = (y + wp_ref[pp + 6:pp + 7, :dout]).astype(out_ref.dtype)


def prepare_conv1d_block_params(params, output_shape):
    """One-time layout work. Call ONCE when parameters are created, not per forward."""
    (w1, b1, g1, be1), (w2, b2, g2, be2), (wl, bl) = params
    w1 = np.asarray(w1, np.float32)   # (C1, C0, K1)  PyTorch OIK
    w2 = np.asarray(w2, np.float32)   # (C2, C1, K2)
    wl = np.asarray(wl, np.float32)   # (Dout, C2*T2) PyTorch (C, T)-flatten columns
    c1, c0, k1 = w1.shape
    c2, _, k2 = w2.shape
    dout = int(np.prod(output_shape))
    t2 = wl.shape[1] // c2

    assert max(c1, c2, dout) <= _LANES, "channel/output dims exceed packed-slab width"

    # Conv weights: OIK -> (K, Cin, Cout) -> (K*Cin, Cout)  (matches im2col concat order).
    w1_p = np.transpose(w1, (2, 1, 0)).reshape(k1 * c0, c1)
    w2_p = np.transpose(w2, (2, 1, 0)).reshape(k2 * c1, c2)
    # Linear weight: permute columns from PyTorch (C, T) order to kernel (T, C)
    # order, then transpose -> (T2*C2, Dout).
    wl_p = np.transpose(wl.reshape(dout, c2, t2), (0, 2, 1)).reshape(dout, t2 * c2).T

    # Pack everything into ONE sublane-aligned (rows, 128) f32 slab -> 2 kernel inputs total.
    off_w1 = 0
    off_w2 = _round_up8(off_w1 + k1 * c0)
    off_wl = _round_up8(off_w2 + k2 * c1)
    off_pp = _round_up8(off_wl + t2 * c2)
    total_rows = off_pp + 8

    wp = np.zeros((total_rows, _LANES), np.float32)
    wp[off_w1:off_w1 + k1 * c0, :c1] = w1_p
    wp[off_w2:off_w2 + k2 * c1, :c2] = w2_p
    wp[off_wl:off_wl + t2 * c2, :dout] = wl_p
    for row, (v, width) in enumerate([(b1, c1), (g1, c1), (be1, c1),
                                      (b2, c2), (g2, c2), (be2, c2),
                                      (bl, dout)]):
        wp[off_pp + row, :width] = np.asarray(v, np.float32).reshape(-1)

    cfg = _BlockCfg(c0=c0, c1=c1, c2=c2, k1=k1, k2=k2, t2=t2, dout=dout,
                    off_w1=off_w1, off_w2=off_w2, off_wl=off_wl, off_pp=off_pp)
    return jnp.asarray(wp), cfg


@partial(jax.jit, static_argnames=("cfg", "output_shape"))
def conv1d_block_forward(x_nct, wp, *, cfg, output_shape):
    """Per-call path: NCT -> NTC transpose + one pallas_call (everything else precomputed)."""
    n = x_nct.shape[0]
    x_ntc = jnp.transpose(x_nct, (0, 2, 1))                      # (N, T0, C0)

    vmem = pl.BlockSpec(memory_space=pltpu.MemorySpace.VMEM)
    # Whole problem (~140 KB) fits trivially in VMEM -> single grid point, 2 input DMAs.
    # TODO(synk): for scaled configs add a grid over N/T with "parallel"
    # dimension_semantics (per-shard BN stats need a cross-block reduction),
    # bf16 casts for the MXU, and an explicit vmem_limit_bytes for v7x (64 MiB VMEM).
    out_flat = pl.pallas_call(
        partial(_conv1d_block_kernel, cfg=cfg),
        out_shape=jax.ShapeDtypeStruct((n, cfg.dout), jnp.float32),
        in_specs=[vmem, vmem],
        out_specs=vmem,
    )(x_ntc, wp)

    return out_flat.reshape((n,) + tuple(output_shape))


def _reference_forward(x_nct, params, output_shape):
    """Pure-JAX reference mirroring PyTorch semantics (NCT layout)."""
    (w1, b1, g1, be1), (w2, b2, g2, be2), (wl, bl) = params
    h = x_nct

    def conv_relu_bn(h, w, b, gamma, beta):
        h = jax.lax.conv_general_dilated(
            h, w, window_strides=(1,), padding='VALID',
            dimension_numbers=('NCH', 'OIH', 'NCH'))
        h = jnp.maximum(h + b[None, :, None], 0.0)
        mean = jnp.mean(h, axis=(0, 2), keepdims=True)
        var = jnp.mean((h - mean) ** 2, axis=(0, 2), keepdims=True)
        h = (h - mean) * jax.lax.rsqrt(var + EPS)
        return h * gamma[None, :, None] + beta[None, :, None]

    h = conv_relu_bn(h, w1, b1, g1, be1)
    h = conv_relu_bn(h, w2, b2, g2, be2)
    flat = h.reshape(h.shape[0], -1)            # PyTorch flattens over (C, T)
    y = flat @ wl.T + bl
    return y.reshape((h.shape[0],) + tuple(output_shape))


if __name__ == "__main__":
    # Module config: input_shape=[C=4, T=16], out_chans_per_layer=[8, 16],
    # kernel_size=3, stride=1, use_batch_norm=True, output_shape=(4, 3).
    N, C0, T0 = 2, 4, 16
    chans = [8, 16]
    K = 3
    output_shape = (4, 3)
    T1 = T0 - K + 1          # 14
    T2 = T1 - K + 1          # 12
    flat_conv_dim = chans[-1] * T2   # 192
    dout = int(np.prod(output_shape))

    key = jax.random.PRNGKey(0)
    ks = jax.random.split(key, 12)
    x = jax.random.normal(ks[0], (N, C0, T0), jnp.float32)

    # Deterministic synthetic parameters (PyTorch layouts).
    w1 = jax.random.normal(ks[1], (chans[0], C0, K), jnp.float32) * 0.2
    b1 = jax.random.normal(ks[2], (chans[0],), jnp.float32) * 0.1
    g1 = 1.0 + 0.1 * jax.random.normal(ks[3], (chans[0],), jnp.float32)
    be1 = 0.1 * jax.random.normal(ks[4], (chans[0],), jnp.float32)

    w2 = jax.random.normal(ks[5], (chans[1], chans[0], K), jnp.float32) * 0.2
    b2 = jax.random.normal(ks[6], (chans[1],), jnp.float32) * 0.1
    g2 = 1.0 + 0.1 * jax.random.normal(ks[7], (chans[1],), jnp.float32)
    be2 = 0.1 * jax.random.normal(ks[8], (chans[1],), jnp.float32)

    wl = jax.random.normal(ks[9], (dout, flat_conv_dim), jnp.float32) * 0.05
    bl = jax.random.normal(ks[10], (dout,), jnp.float32) * 0.1

    params = ((w1, b1, g1, be1), (w2, b2, g2, be2), (wl, bl))

    # One-time layout/packing work (hoisted out of the per-call path).
    wp, cfg = prepare_conv1d_block_params(params, output_shape)

    out = conv1d_block_forward(x, wp, cfg=cfg, output_shape=output_shape)
    out = jax.block_until_ready(out)

    ref = jax.block_until_ready(_reference_forward(x, params, output_shape))
    assert out.shape == (N,) + output_shape, out.shape
    np.testing.assert_allclose(np.asarray(out), np.asarray(ref), rtol=1e-4, atol=1e-4)

    print("KERNEL_OK")
</pallas_src>

<mosaic_0001>
module attributes {stable_mosaic.version = 11 : i64} {
  func.func @_conv1d_block_kernel(%arg0: memref<2x16x4xf32, #tpu.memory_space<vmem>>, %arg1: memref<240x128xf32, #tpu.memory_space<vmem>>, %arg2: memref<2x12xf32, #tpu.memory_space<vmem>>) attributes {dimension_semantics = [], scalar_prefetch = 0 : i64, scratch_operands = 0 : i64, tpu.core_type = #tpu.core_type<tc>} {
    %c0 = arith.constant 0 : index
    %c0_0 = arith.constant 0 : index
    %c0_1 = arith.constant 0 : index
    %0 = vector.load %arg0[%c0, %c0_0, %c0_1] : memref<2x16x4xf32, #tpu.memory_space<vmem>>, vector<2x16x4xf32>
    %c0_2 = arith.constant 0 : index
    %c0_3 = arith.constant 0 : index
    %1 = vector.load %arg1[%c0_2, %c0_3] : memref<240x128xf32, #tpu.memory_space<vmem>>, vector<12x8xf32>
    %c16 = arith.constant 16 : index
    %c0_4 = arith.constant 0 : index
    %2 = vector.load %arg1[%c16, %c0_4] : memref<240x128xf32, #tpu.memory_space<vmem>>, vector<24x16xf32>
    %c40 = arith.constant 40 : index
    %c0_5 = arith.constant 0 : index
    %3 = vector.load %arg1[%c40, %c0_5] : memref<240x128xf32, #tpu.memory_space<vmem>>, vector<192x12xf32>
    %c232 = arith.constant 232 : index
    %c0_6 = arith.constant 0 : index
    %4 = vector.load %arg1[%c232, %c0_6] : memref<240x128xf32, #tpu.memory_space<vmem>>, vector<1x8xf32>
    %c233 = arith.constant 233 : index
    %c0_7 = arith.constant 0 : index
    %5 = vector.load %arg1[%c233, %c0_7] : memref<240x128xf32, #tpu.memory_space<vmem>>, vector<1x8xf32>
    %c234 = arith.constant 234 : index
    %c0_8 = arith.constant 0 : index
    %6 = vector.load %arg1[%c234, %c0_8] : memref<240x128xf32, #tpu.memory_space<vmem>>, vector<1x8xf32>
    %7 = vector.extract_strided_slice %0 {offsets = [0, 0, 0], sizes = [2, 14, 4], strides = [1, 1, 1]} : vector<2x16x4xf32> to vector<2x14x4xf32>
    %8 = vector.extract_strided_slice %0 {offsets = [0, 1, 0], sizes = [2, 14, 4], strides = [1, 1, 1]} : vector<2x16x4xf32> to vector<2x14x4xf32>
    %9 = vector.extract_strided_slice %0 {offsets = [0, 2, 0], sizes = [2, 14, 4], strides = [1, 1, 1]} : vector<2x16x4xf32> to vector<2x14x4xf32>
    %10 = tpu.concatenate %7, %8, %9 in 2 : vector<2x14x4xf32>, vector<2x14x4xf32>, vector<2x14x4xf32> -> vector<2x14x12xf32>
    %cst = arith.constant dense<0.000000e+00> : vector<2x14x8xf32>
    %11 = tpu.matmul %10, %1, %cst {dimension_numbers = #tpu.dot_dimension_numbers<[2], [0], [0, 1], [1], [0, 0, 0, 1, 1, 1], [], []>} : vector<2x14x12xf32>, vector<12x8xf32>, vector<2x14x8xf32> -> vector<2x14x8xf32>
    %12 = vector.shape_cast %4 : vector<1x8xf32> to vector<1x1x8xf32>
    %13 = vector.broadcast %12 : vector<1x1x8xf32> to vector<2x14x8xf32>
    %14 = arith.addf %11, %13 : vector<2x14x8xf32>
    %cst_9 = arith.constant 0.000000e+00 : f32
    %15 = vector.broadcast %cst_9 : f32 to vector<2x14x8xf32>
    %16 = arith.maximumf %14, %15 : vector<2x14x8xf32>
    %cst_10 = arith.constant dense<0.000000e+00> : vector<14x8xf32>
    %17 = vector.multi_reduction <add>, %16, %cst_10 [0] : vector<2x14x8xf32> to vector<14x8xf32>
    %cst_11 = arith.constant dense<0.000000e+00> : vector<8xf32>
    %18 = vector.multi_reduction <add>, %17, %cst_11 [0] : vector<14x8xf32> to vector<8xf32>
    %19 = vector.shape_cast %18 : vector<8xf32> to vector<1x8xf32>
    %cst_12 = arith.constant 0.0357142873 : f32
    %20 = vector.broadcast %cst_12 : f32 to vector<1x8xf32>
    %21 = arith.mulf %19, %20 : vector<1x8xf32>
    %22 = arith.mulf %16, %16 : vector<2x14x8xf32>
    %cst_13 = arith.constant dense<0.000000e+00> : vector<14x8xf32>
    %23 = vector.multi_reduction <add>, %22, %cst_13 [0] : vector<2x14x8xf32> to vector<14x8xf32>
    %cst_14 = arith.constant dense<0.000000e+00> : vector<8xf32>
    %24 = vector.multi_reduction <add>, %23, %cst_14 [0] : vector<14x8xf32> to vector<8xf32>
    %25 = vector.shape_cast %24 : vector<8xf32> to vector<1x8xf32>
    %cst_15 = arith.constant 0.0357142873 : f32
    %26 = vector.broadcast %cst_15 : f32 to vector<1x8xf32>
    %27 = arith.mulf %25, %26 : vector<1x8xf32>
    %28 = arith.mulf %21, %21 : vector<1x8xf32>
    %29 = arith.subf %27, %28 : vector<1x8xf32>
    %30 = vector.shape_cast %21 : vector<1x8xf32> to vector<1x1x8xf32>
    %31 = vector.broadcast %30 : vector<1x1x8xf32> to vector<2x14x8xf32>
    %32 = arith.subf %16, %31 : vector<2x14x8xf32>
    %cst_16 = arith.constant 9.99999974E-6 : f32
    %33 = vector.broadcast %cst_16 : f32 to vector<1x8xf32>
    %34 = arith.addf %29, %33 : vector<1x8xf32>
    %35 = math.rsqrt %34 : vector<1x8xf32>
    %36 = vector.shape_cast %35 : vector<1x8xf32> to vector<1x1x8xf32>
    %37 = vector.broadcast %36 : vector<1x1x8xf32> to vector<2x14x8xf32>
    %38 = arith.mulf %32, %37 : vector<2x14x8xf32>
    %39 = vector.shape_cast %5 : vector<1x8xf32> to vector<1x1x8xf32>
    %40 = vector.broadcast %39 : vector<1x1x8xf32> to vector<2x14x8xf32>
    %41 = arith.mulf %38, %40 : vector<2x14x8xf32>
    %42 = vector.shape_cast %6 : vector<1x8xf32> to vector<1x1x8xf32>
    %43 = vector.broadcast %42 : vector<1x1x8xf32> to vector<2x14x8xf32>
    %44 = arith.addf %41, %43 : vector<2x14x8xf32>
    %c235 = arith.constant 235 : index
    %c0_17 = arith.constant 0 : index
    %45 = vector.load %arg1[%c235, %c0_17] : memref<240x128xf32, #tpu.memory_space<vmem>>, vector<1x16xf32>
    %c236 = arith.constant 236 : index
    %c0_18 = arith.constant 0 : index
    %46 = vector.load %arg1[%c236, %c0_18] : memref<240x128xf32, #tpu.memory_space<vmem>>, vector<1x16xf32>
    %c237 = arith.constant 237 : index
    %c0_19 = arith.constant 0 : index
    %47 = vector.load %arg1[%c237, %c0_19] : memref<240x128xf32, #tpu.memory_space<vmem>>, vector<1x16xf32>
    %48 = vector.extract_strided_slice %44 {offsets = [0, 0, 0], sizes = [2, 12, 8], strides = [1, 1, 1]} : vector<2x14x8xf32> to vector<2x12x8xf32>
    %49 = vector.extract_strided_slice %44 {offsets = [0, 1, 0], sizes = [2, 12, 8], strides = [1, 1, 1]} : vector<2x14x8xf32> to vector<2x12x8xf32>
    %50 = vector.extract_strided_slice %44 {offsets = [0, 2, 0], sizes = [2, 12, 8], strides = [1, 1, 1]} : vector<2x14x8xf32> to vector<2x12x8xf32>
    %51 = tpu.concatenate %48, %49, %50 in 2 : vector<2x12x8xf32>, vector<2x12x8xf32>, vector<2x12x8xf32> -> vector<2x12x24xf32>
    %cst_20 = arith.constant dense<0.000000e+00> : vector<2x12x16xf32>
    %52 = tpu.matmul %51, %2, %cst_20 {dimension_numbers = #tpu.dot_dimension_numbers<[2], [0], [0, 1], [1], [0, 0, 0, 1, 1, 1], [], []>} : vector<2x12x24xf32>, vector<24x16xf32>, vector<2x12x16xf32> -> vector<2x12x16xf32>
    %53 = vector.shape_cast %45 : vector<1x16xf32> to vector<1x1x16xf32>
    %54 = vector.broadcast %53 : vector<1x1x16xf32> to vector<2x12x16xf32>
    %55 = arith.addf %52, %54 : vector<2x12x16xf32>
    %cst_21 = arith.constant 0.000000e+00 : f32
    %56 = vector.broadcast %cst_21 : f32 to vector<2x12x16xf32>
    %57 = arith.maximumf %55, %56 : vector<2x12x16xf32>
    %cst_22 = arith.constant dense<0.000000e+00> : vector<12x16xf32>
    %58 = vector.multi_reduction <add>, %57, %cst_22 [0] : vector<2x12x16xf32> to vector<12x16xf32>
    %cst_23 = arith.constant dense<0.000000e+00> : vector<16xf32>
    %59 = vector.multi_reduction <add>, %58, %cst_23 [0] : vector<12x16xf32> to vector<16xf32>
    %60 = vector.shape_cast %59 : vector<16xf32> to vector<1x16xf32>
    %cst_24 = arith.constant 0.0416666679 : f32
    %61 = vector.broadcast %cst_24 : f32 to vector<1x16xf32>
    %62 = arith.mulf %60, %61 : vector<1x16xf32>
    %63 = arith.mulf %57, %57 : vector<2x12x16xf32>
    %cst_25 = arith.constant dense<0.000000e+00> : vector<12x16xf32>
    %64 = vector.multi_reduction <add>, %63, %cst_25 [0] : vector<2x12x16xf32> to vector<12x16xf32>
    %cst_26 = arith.constant dense<0.000000e+00> : vector<16xf32>
    %65 = vector.multi_reduction <add>, %64, %cst_26 [0] : vector<12x16xf32> to vector<16xf32>
    %66 = vector.shape_cast %65 : vector<16xf32> to vector<1x16xf32>
    %cst_27 = arith.constant 0.0416666679 : f32
    %67 = vector.broadcast %cst_27 : f32 to vector<1x16xf32>
    %68 = arith.mulf %66, %67 : vector<1x16xf32>
    %69 = arith.mulf %62, %62 : vector<1x16xf32>
    %70 = arith.subf %68, %69 : vector<1x16xf32>
    %71 = vector.shape_cast %62 : vector<1x16xf32> to vector<1x1x16xf32>
    %72 = vector.broadcast %71 : vector<1x1x16xf32> to vector<2x12x16xf32>
    %73 = arith.subf %57, %72 : vector<2x12x16xf32>
    %cst_28 = arith.constant 9.99999974E-6 : f32
    %74 = vector.broadcast %cst_28 : f32 to vector<1x16xf32>
    %75 = arith.addf %70, %74 : vector<1x16xf32>
    %76 = math.rsqrt %75 : vector<1x16xf32>
    %77 = vector.shape_cast %76 : vector<1x16xf32> to vector<1x1x16xf32>
    %78 = vector.broadcast %77 : vector<1x1x16xf32> to vector<2x12x16xf32>
    %79 = arith.mulf %73, %78 : vector<2x12x16xf32>
    %80 = vector.shape_cast %46 : vector<1x16xf32> to vector<1x1x16xf32>
    %81 = vector.broadcast %80 : vector<1x1x16xf32> to vector<2x12x16xf32>
    %82 = arith.mulf %79, %81 : vector<2x12x16xf32>
    %83 = vector.shape_cast %47 : vector<1x16xf32> to vector<1x1x16xf32>
    %84 = vector.broadcast %83 : vector<1x1x16xf32> to vector<2x12x16xf32>
    %85 = arith.addf %82, %84 : vector<2x12x16xf32>
    %86 = vector.shape_cast %85 : vector<2x12x16xf32> to vector<2x192xf32>
    %cst_29 = arith.constant dense<0.000000e+00> : vector<2x12xf32>
    %87 = tpu.matmul %86, %3, %cst_29 {dimension_numbers = #tpu.dot_dimension_numbers<[1], [0], [0], [1], [0, 0, 1, 1], [], []>} : vector<2x192xf32>, vector<192x12xf32>, vector<2x12xf32> -> vector<2x12xf32>
    %c238 = arith.constant 238 : index
    %c0_30 = arith.constant 0 : index
    %88 = vector.load %arg1[%c238, %c0_30] : memref<240x128xf32, #tpu.memory_space<vmem>>, vector<1x12xf32>
    %89 = vector.broadcast %88 : vector<1x12xf32> to vector<2x12xf32>
    %90 = arith.addf %87, %89 : vector<2x12xf32>
    %c0_31 = arith.constant 0 : index
    %c0_32 = arith.constant 0 : index
    %91 = vector.load %arg2[%c0_31, %c0_32] : memref<2x12xf32, #tpu.memory_space<vmem>>, vector<2x12xf32>
    tpu.vector_store %arg2[%c0_31, %c0_32], %90 {strides = array<i32>} : memref<2x12xf32, #tpu.memory_space<vmem>>, vector<2x12xf32>,
    return
  }
}

</mosaic_0001>

<llo_original>
// kernel: conv1d_block_forward.1
$region0: #{conv1d_block_forward.1}
  #allocation0 [shape = 'u32[]', space=smem, size = 0x4, offset = 0x4, fixed_abs, tag = 'smem constant byte address 0x4 - core index']
  #allocation1 [shape = 'u32[144,128]{1,0:T(1,128)}', space=vmem, size = 0x12000, scoped, tag = 'internal scratch']
  %s0 = inlined_call_operand.vmem [shape: f32[2,16,4], index: 0, kind: input, shape index: {}]
  %s1 = inlined_call_operand.hbm [shape: f32[240,128], index: 1, kind: input, shape index: {}]
  %s2 = inlined_call_operand.vmem [shape: f32[2,12], index: 2, kind: output, shape index: {}]
  %s3 = sld [smem:[#allocation0]]
  $region22: #{conv1d_block_forward.1} parent=0
    _
  %s5 = ssub.s32 1, %s3
  %s6 = scalar_select 0, %s5, %s3
  $region1: #{conv1d_block_forward.1} parent=0
    #allocation2 [shape = 'u8[122880]{0}', space=vmem, size = 0x1e000, scoped, tag = 'input window, operand 1, single buffered']
    #allocation3 [shape = 's32[1]{0}', space=sflag, size = 0x4, scoped, tag = 'scoped memory for conv1d_block_forward.1']
    %7 = vsyncpa [#allocation3], 0
    // Predicated region
    $region2: #{conv1d_block_forward.1} parent=1 // pred_check
      _
    $region3: #{conv1d_block_forward.1} parent=1 // pred_check_branch
      %9 = sbr.rel (0) target = $region5
    $region4: #{conv1d_block_forward.1} parent=1 // pred_region
      _
    $region5: #{conv1d_block_forward.1} parent=1 // pred_fallthru
      _
    // Predicated region
    $region6: #{conv1d_block_forward.1} parent=1 // pred_check
      _
    $region7: #{conv1d_block_forward.1} parent=1 // pred_check_branch
      %11 = sbr.rel (0) target = $region9
    $region8: #{conv1d_block_forward.1} parent=1 // pred_region
      %s13 = ssub.s32 3840, 3840
      %14 = vsyncadd [#allocation3], %s13
      %s15 = sshll.u32 [#allocation2], 4
      %s16 = int_to_ptr.vmem [resolvable:$true] %s15
      %21 = dma.hbm_to_vmem [thread:$0]  %s1, 3840, %s16, [#allocation3], 128, 128, 8
    $region9: #{conv1d_block_forward.1} parent=1 // pred_fallthru
      _
    // Predicated region
    $region10: #{conv1d_block_forward.1} parent=1 // pred_check
      _
    $region11: #{conv1d_block_forward.1} parent=1 // pred_check_branch
      %23 = sbr.rel (0) target = $region13
    $region12: #{conv1d_block_forward.1} parent=1 // pred_region
      %24 = dma.done [#allocation3], 3840
    $region13: #{conv1d_block_forward.1} parent=1 // pred_fallthru
      _
    %v25 = vld [vmem:[%s0] sm:$0xff]
    %v26 = vld [vmem:[%s0 + $0x8] sm:$0xff]
    %v27 = vld [vmem:[%s0 + $0x10] sm:$0xff]
    %v28 = vld [vmem:[%s0 + $0x18] sm:$0xff]
    %v29 = vld [vmem:[#allocation2] sm:$0xff]
    %v30 = vld [vmem:[#allocation2 + $0x8] sm:$0xf]
    %v31 = vld [vmem:[#allocation2 + $0x10] sm:$0xff]
    %v32 = vld [vmem:[#allocation2 + $0x18] sm:$0xff]
    %v33 = vld [vmem:[#allocation2 + $0x20] sm:$0xff]
    %v34 = vld [vmem:[#allocation2 + $0x28] sm:$0xff]
    %v35 = vld [vmem:[#allocation2 + $0x30] sm:$0xff]
    %v36 = vld [vmem:[#allocation2 + $0x38] sm:$0xff]
    %v37 = vld [vmem:[#allocation2 + $0x40] sm:$0xff]
    %v38 = vld [vmem:[#allocation2 + $0x48] sm:$0xff]
    %v39 = vld [vmem:[#allocation2 + $0x50] sm:$0xff]
    %v40 = vld [vmem:[#allocation2 + $0x58] sm:$0xff]
    %v41 = vld [vmem:[#allocation2 + $0x60] sm:$0xff]
    %v42 = vld [vmem:[#allocation2 + $0x68] sm:$0xff]
    %v43 = vld [vmem:[#allocation2 + $0x70] sm:$0xff]
    %v44 = vld [vmem:[#allocation2 + $0x78] sm:$0xff]
    %v45 = vld [vmem:[#allocation2 + $0x80] sm:$0xff]
    %v46 = vld [vmem:[#allocation2 + $0x88] sm:$0xff]
    %v47 = vld [vmem:[#allocation2 + $0x90] sm:$0xff]
    %v48 = vld [vmem:[#allocation2 + $0x98] sm:$0xff]
    %v49 = vld [vmem:[#allocation2 + $0xa0] sm:$0xff]
    %v50 = vld [vmem:[#allocation2 + $0xa8] sm:$0xff]
    %v51 = vld [vmem:[#allocation2 + $0xb0] sm:$0xff]
    %v52 = vld [vmem:[#allocation2 + $0xb8] sm:$0xff]
    %v53 = vld [vmem:[#allocation2 + $0xc0] sm:$0xff]
    %v54 = vld [vmem:[#allocation2 + $0xc8] sm:$0xff]
    %v55 = vld [vmem:[#allocation2 + $0xd0] sm:$0xff]
    %v56 = vld [vmem:[#allocation2 + $0xd8] sm:$0xff]
    %v57 = vld [vmem:[#allocation2 + $0xe0] sm:$0xff]
    %v58 = vld [vmem:[#allocation2 + $0xe8] sm:$0x1]
    %v59 = vld [vmem:[#allocation2 + $0xe9] sm:$0x1]
    %v60 = vld [vmem:[#allocation2 + $0xea] sm:$0x1]
    %vm65 = vcmask 1046528
    %v66 = vrot.slane %v25, 1
    %v67 = vrot.slane %v26, 1
    %v68 = vsel %vm65, %v66, %v67
    %v69 = vrot.slane %v27, 1
    %v70 = vrot.slane %v28, 1
    %v71 = vsel %vm65, %v69, %v70
    %72 = vrot.lane.b32.xlu0 %v68, 4
    %v73 = vpop.permute.xlu0 %72
    %74 = vrot.lane.b32.xlu0 %v67, 4
    %v75 = vpop.permute.xlu0 %74
    %76 = vrot.lane.b32.xlu0 %v71, 4
    %v77 = vpop.permute.xlu0 %76
    %78 = vrot.lane.b32.xlu0 %v70, 4
    %v79 = vpop.permute.xlu0 %78
    %vm84 = vcmask 1045504
    %v85 = vrot.slane %v25, 2
    %v86 = vrot.slane %v26, 2
    %v87 = vsel %vm84, %v85, %v86
    %v88 = vrot.slane %v27, 2
    %v89 = vrot.slane %v28, 2
    %v90 = vsel %vm84, %v88, %v89
    %91 = vrot.lane.b32.xlu0 %v87, 8
    %v92 = vpop.permute.xlu0 %91
    %93 = vrot.lane.b32.xlu0 %v86, 8
    %v94 = vpop.permute.xlu0 %93
    %95 = vrot.lane.b32.xlu0 %v90, 8
    %v96 = vpop.permute.xlu0 %95
    %97 = vrot.lane.b32.xlu0 %v89, 8
    %v98 = vpop.permute.xlu0 %97
    %vm103 = vcmask 31744
    %v104 = vsel %vm103, %v25, %v73
    %v105 = vsel %vm103, %v26, %v75
    %v106 = vsel %vm103, %v27, %v77
    %v107 = vsel %vm103, %v28, %v79
    %vm108 = vcmask 64512
    %v109 = vsel %vm108, %v104, %v92
    %v110 = vsel %vm108, %v105, %v94
    %v111 = vsel %vm108, %v106, %v96
    %v112 = vsel %vm108, %v107, %v98
    %v113 = vlaneseq
    %v114 = vshrl.u32 %v113, 7
    %v115 = vsub.s32 0, %v114
    %v116 = vrot.slane %v58, %v115
    %v121 = vcombine.high %v109, %v109
    %v123 = vunpack.c.l.s4 1983009808
    %v124 = vunpack.c.0.s8 %v123
    %v125 = vlaneseq
    %v126 = vshrl.u32 %v125, 7
    %v127 = vsub.s32 %v124, %v126
    %v128 = vrot.slane %v109, %v127
    %v130 = vunpack.c.l.s4 1983009808
    %v131 = vunpack.c.0.s8 %v130
    %v132 = vlaneseq
    %v133 = vshrl.u32 %v132, 7
    %v134 = vsub.s32 %v131, %v133
    %v135 = vrot.slane %v121, %v134
    %v136 = vcombine.high %v128, %v128
    %v137 = vcombine.high %v135, %v135
    %v138 = vcombine.high %v110, %v110
    %v140 = vunpack.c.l.s4 1983009808
    %v141 = vunpack.c.0.s8 %v140
    %v142 = vlaneseq
    %v143 = vshrl.u32 %v142, 7
    %v144 = vsub.s32 %v141, %v143
    %v145 = vrot.slane %v110, %v144
    %v147 = vunpack.c.l.s4 1983009808
    %v148 = vunpack.c.0.s8 %v147
    %v149 = vlaneseq
    %v150 = vshrl.u32 %v149, 7
    %v151 = vsub.s32 %v148, %v150
    %v152 = vrot.slane %v138, %v151
    %v153 = vcombine.high %v145, %v145
    %v154 = vcombine.high %v111, %v111
    %v156 = vunpack.c.l.s4 1983009808
    %v157 = vunpack.c.0.s8 %v156
    %v158 = vlaneseq
    %v159 = vshrl.u32 %v158, 7
    %v160 = vsub.s32 %v157, %v159
    %v161 = vrot.slane %v111, %v160
    %v163 = vunpack.c.l.s4 1983009808
    %v164 = vunpack.c.0.s8 %v163
    %v165 = vlaneseq
    %v166 = vshrl.u32 %v165, 7
    %v167 = vsub.s32 %v164, %v166
    %v168 = vrot.slane %v154, %v167
    %v169 = vcombine.high %v161, %v161
    %v170 = vcombine.high %v168, %v168
    %v171 = vcombine.high %v112, %v112
    %v173 = vunpack.c.l.s4 1983009808
    %v174 = vunpack.c.0.s8 %v173
    %v175 = vlaneseq
    %v176 = vshrl.u32 %v175, 7
    %v177 = vsub.s32 %v174, %v176
    %v178 = vrot.slane %v112, %v177
    %v180 = vunpack.c.l.s4 1983009808
    %v181 = vunpack.c.0.s8 %v180
    %v182 = vlaneseq
    %v183 = vshrl.u32 %v182, 7
    %v184 = vsub.s32 %v181, %v183
    %v185 = vrot.slane %v171, %v184
    %v186 = vcombine.high %v178, %v178
    %v188 = vcombine.high %v116, %v116
    %v190 = vunpack.c.l.s4 1983009808
    %v191 = vunpack.c.0.s8 %v190
    %v192 = vlaneseq
    %v193 = vshrl.u32 %v192, 7
    %v194 = vsub.s32 %v191, %v193
    %v195 = vrot.slane %v116, %v194
    %v197 = vunpack.c.l.s4 1983009808
    %v198 = vunpack.c.0.s8 %v197
    %v199 = vlaneseq
    %v200 = vshrl.u32 %v199, 7
    %v201 = vsub.s32 %v198, %v200
    %v202 = vrot.slane %v188, %v201
    %v203 = vcombine.high %v195, %v195
    %v204 = vcombine.high %v202, %v202
    %v205 = vcombine.low %v128, %v136
    %v206 = vcombine.low %v135, %v137
    %v208 = vunpack.c.l.s4 1983009808
    %v209 = vunpack.c.0.s8 %v208
    %v210 = vlaneseq
    %v211 = vshrl.u32 %v210, 7
    %v212 = vsub.s32 %v209, %v211
    %v213 = vrot.slane %v205, %v212
    %v215 = vunpack.c.l.s4 1983009808
    %v216 = vunpack.c.0.s8 %v215
    %v217 = vlaneseq
    %v218 = vshrl.u32 %v217, 7
    %v219 = vsub.s32 %v216, %v218
    %v220 = vrot.slane %v206, %v219
    %v221 = vcombine.low %v213, %v220
    %v222 = vcombine.low %v145, %v153
    %v223 = vcombine.low %v152, %v161
    %v225 = vunpack.c.l.s4 1983009808
    %v226 = vunpack.c.0.s8 %v225
    %v227 = vlaneseq
    %v228 = vshrl.u32 %v227, 7
    %v229 = vsub.s32 %v226, %v228
    %v230 = vrot.slane %v222, %v229
    %v232 = vunpack.c.l.s4 1983009808
    %v233 = vunpack.c.0.s8 %v232
    %v234 = vlaneseq
    %v235 = vshrl.u32 %v234, 7
    %v236 = vsub.s32 %v233, %v235
    %v237 = vrot.slane %v223, %v236
    %v238 = vcombine.low %v230, %v237
    %v239 = vcombine.low %v169, %v168
    %v240 = vcombine.low %v170, %v178
    %v242 = vunpack.c.l.s4 1983009808
    %v243 = vunpack.c.0.s8 %v242
    %v244 = vlaneseq
    %v245 = vshrl.u32 %v244, 7
    %v246 = vsub.s32 %v243, %v245
    %v247 = vrot.slane %v239, %v246
    %v249 = vunpack.c.l.s4 1983009808
    %v250 = vunpack.c.0.s8 %v249
    %v251 = vlaneseq
    %v252 = vshrl.u32 %v251, 7
    %v253 = vsub.s32 %v250, %v252
    %v254 = vrot.slane %v240, %v253
    %v255 = vcombine.low %v247, %v254
    %v256 = vcombine.low %v186, %v185
    %v258 = vunpack.c.l.s4 1983009808
    %v259 = vunpack.c.0.s8 %v258
    %v260 = vlaneseq
    %v261 = vshrl.u32 %v260, 7
    %v262 = vsub.s32 %v259, %v261
    %v263 = vrot.slane %v256, %v262
    %v264 = vcombine.low %v195, %v203
    %v265 = vcombine.low %v202, %v204
    %v267 = vunpack.c.l.s4 1983009808
    %v268 = vunpack.c.0.s8 %v267
    %v269 = vlaneseq
    %v270 = vshrl.u32 %v269, 7
    %v271 = vsub.s32 %v268, %v270
    %v272 = vrot.slane %v264, %v271
    %v274 = vunpack.c.l.s4 1983009808
    %v275 = vunpack.c.0.s8 %v274
    %v276 = vlaneseq
    %v277 = vshrl.u32 %v276, 7
    %v278 = vsub.s32 %v275, %v277
    %v279 = vrot.slane %v265, %v278
    %v280 = vcombine.low %v272, %v279
    %v281 = vcombine.low %v202, %v195
    %v283 = vunpack.c.l.s4 1983009808
    %v284 = vunpack.c.0.s8 %v283
    %v285 = vlaneseq
    %v286 = vshrl.u32 %v285, 7
    %v287 = vsub.s32 %v284, %v286
    %v288 = vrot.slane %v281, %v287
    %v289 = vcombine.low %v272, %v288
    %v290 = vcombine.low %v203, %v202
    %v291 = vcombine.low %v204, %v195
    %v293 = vunpack.c.l.s4 1983009808
    %v294 = vunpack.c.0.s8 %v293
    %v295 = vlaneseq
    %v296 = vshrl.u32 %v295, 7
    %v297 = vsub.s32 %v294, %v296
    %v298 = vrot.slane %v290, %v297
    %v300 = vunpack.c.l.s4 1983009808
    %v301 = vunpack.c.0.s8 %v300
    %v302 = vlaneseq
    %v303 = vshrl.u32 %v302, 7
    %v304 = vsub.s32 %v301, %v303
    %v305 = vrot.slane %v291, %v304
    %v306 = vcombine.low %v298, %v305
    %vm311 = vcmask 97280
    %v312 = vsel %vm311, %v221, 0
    %v314 = vsel %vm311, %v238, 0
    %v316 = vsel %vm311, %v255, 0
    %v318 = vsel %vm311, %v263, 0
    %vm320 = vcmask 1043456
    %v322 = vsel %vm320, %v30, 0
    %324 = vmatprep.subr.mxu0 0.0
    %325 = vmatpush1.msra.mxu0 0.0
    %326 = vmatprep.subr.mxu0 0.0
    %327 = vmatpush1.msra.mxu0 0.0
    %328 = vmatprep.subr.mxu0 0.0
    %329 = vmatpush1.msra.mxu0 0.0
    %330 = vmatprep.subr.mxu0 0.0
    %331 = vmatpush1.msra.mxu0 0.0
    %332 = vmatprep.subr.mxu0 0.0
    %333 = vmatpush1.msra.mxu0 0.0
    %334 = vmatprep.subr.mxu0 0.0
    %335 = vmatpush1.msra.mxu0 0.0
    %336 = vmatprep.subr.mxu0 0.0
    %337 = vmatpush1.msra.mxu0 0.0
    %338 = vmatprep.subr.mxu0 0.0
    %339 = vmatpush1.msra.mxu0 0.0
    %340 = vmatprep.subr.mxu0 0.0
    %341 = vmatpush1.msra.mxu0 0.0
    %342 = vmatprep.subr.mxu0 0.0
    %343 = vmatpush1.msra.mxu0 0.0
    %344 = vmatprep.subr.mxu0 0.0
    %345 = vmatpush1.msra.mxu0 0.0
    %346 = vmatprep.subr.mxu0 0.0
    %347 = vmatpush1.msra.mxu0 0.0
    %348 = vmatprep.subr.mxu0 0.0
    %349 = vmatpush1.msra.mxu0 0.0
    %350 = vmatprep.subr.mxu0 0.0
    %351 = vmatpush1.msra.mxu0 0.0
    %352 = vmatprep.subr.mxu0 0.0
    %353 = vmatpush1.msra.mxu0 %v322
    %354 = vmatprep.subr.mxu0 0.0
    %355 = vmatpush1.msra.mxu0 %v29
    %356 = vmatprep.subr.mxu0 0.0
    %357 = vmatpush2.msra.mxu0 0.0
    %358 = vmatprep.subr.mxu0 0.0
    %359 = vmatpush2.msra.mxu0 0.0
    %360 = vmatprep.subr.mxu0 0.0
    %361 = vmatpush2.msra.mxu0 0.0
    %362 = vmatprep.subr.mxu0 0.0
    %363 = vmatpush2.msra.mxu0 0.0
    %364 = vmatprep.subr.mxu0 0.0
    %365 = vmatpush2.msra.mxu0 0.0
    %366 = vmatprep.subr.mxu0 0.0
    %367 = vmatpush2.msra.mxu0 0.0
    %368 = vmatprep.subr.mxu0 0.0
    %369 = vmatpush2.msra.mxu0 0.0
    %370 = vmatprep.subr.mxu0 0.0
    %371 = vmatpush2.msra.mxu0 0.0
    %372 = vmatprep.subr.mxu0 0.0
    %373 = vmatpush2.msra.mxu0 0.0
    %374 = vmatprep.subr.mxu0 0.0
    %375 = vmatpush2.msra.mxu0 0.0
    %376 = vmatprep.subr.mxu0 0.0
    %377 = vmatpush2.msra.mxu0 0.0
    %378 = vmatprep.subr.mxu0 0.0
    %379 = vmatpush2.msra.mxu0 0.0
    %380 = vmatprep.subr.mxu0 0.0
    %381 = vmatpush2.msra.mxu0 0.0
    %382 = vmatprep.subr.mxu0 0.0
    %383 = vmatpush2.msra.mxu0 0.0
    %384 = vmatprep.subr.mxu0 0.0
    %385 = vmatpush2.msra.mxu0 0.0
    %386 = vmatprep.subr.mxu0 0.0
    %387 = vmatpush2.msra.mxu0 0.0
    %388 = vmatprep.mubr.f32.mxu0 0.0
    %389 = vmatmul.mubr.f32.gmra.mxu0 %v312
    %v390 = vpop.f32.mrf.mxu0
    %v391 = vadd.f32 %v280, %v390
    %v392 = vpop.f32.mrf.mxu0
    %393 = vmatprep.mubr.f32.mxu0 0.0
    %394 = vmatmul.mubr.f32.gmra.mxu0 %v314
    %v395 = vpop.f32.mrf.mxu0
    %v396 = vadd.f32 %v289, %v395
    %v397 = vpop.f32.mrf.mxu0
    %398 = vmatprep.mubr.f32.mxu0 0.0
    %399 = vmatmul.mubr.f32.gmra.mxu0 %v316
    %v400 = vpop.f32.mrf.mxu0
    %v401 = vadd.f32 %v306, %v400
    %v402 = vpop.f32.mrf.mxu0
    %403 = vmatprep.mubr.f32.mxu0 0.0
    %404 = vmatmul.mubr.f32.gmra.mxu0 %v318
    %v405 = vpop.f32.mrf.mxu0
    %v406 = vadd.f32 %v298, %v405
    %v407 = vpop.f32.mrf.mxu0
    %408 = vdwg.mxu0
    %v413 = vcombine.high %v391, %v391
    %v415 = vunpack.c.l.s4 1983009808
    %v416 = vunpack.c.0.s8 %v415
    %v417 = vlaneseq
    %v418 = vshrl.u32 %v417, 7
    %v419 = vsub.s32 %v416, %v418
    %v420 = vrot.slane %v391, %v419
    %v422 = vunpack.c.l.s4 1983009808
    %v423 = vunpack.c.0.s8 %v422
    %v424 = vlaneseq
    %v425 = vshrl.u32 %v424, 7
    %v426 = vsub.s32 %v423, %v425
    %v427 = vrot.slane %v413, %v426
    %v428 = vcombine.high %v420, %v420
    %v429 = vcombine.high %v427, %v427
    %v430 = vcombine.high %v396, %v396
    %v432 = vunpack.c.l.s4 1983009808
    %v433 = vunpack.c.0.s8 %v432
    %v434 = vlaneseq
    %v435 = vshrl.u32 %v434, 7
    %v436 = vsub.s32 %v433, %v435
    %v437 = vrot.slane %v396, %v436
    %v439 = vunpack.c.l.s4 1983009808
    %v440 = vunpack.c.0.s8 %v439
    %v441 = vlaneseq
    %v442 = vshrl.u32 %v441, 7
    %v443 = vsub.s32 %v440, %v442
    %v444 = vrot.slane %v430, %v443
    %v445 = vcombine.high %v437, %v437
    %v446 = vcombine.high %v444, %v444
    %v447 = vcombine.high %v401, %v401
    %v449 = vunpack.c.l.s4 1983009808
    %v450 = vunpack.c.0.s8 %v449
    %v451 = vlaneseq
    %v452 = vshrl.u32 %v451, 7
    %v453 = vsub.s32 %v450, %v452
    %v454 = vrot.slane %v401, %v453
    %v456 = vunpack.c.l.s4 1983009808
    %v457 = vunpack.c.0.s8 %v456
    %v458 = vlaneseq
    %v459 = vshrl.u32 %v458, 7
    %v460 = vsub.s32 %v457, %v459
    %v461 = vrot.slane %v447, %v460
    %v462 = vcombine.high %v454, %v454
    %v463 = vcombine.high %v461, %v461
    %v465 = vunpack.c.l.s4 1983009808
    %v466 = vunpack.c.0.s8 %v465
    %v467 = vlaneseq
    %v468 = vshrl.u32 %v467, 7
    %v469 = vsub.s32 %v466, %v468
    %v470 = vrot.slane %v406, %v469
    %v471 = vcombine.high %v470, %v470
    %v486 = vmax.f32 %v420, 0.0
    %v487 = vmax.f32 %v428, 0.0
    %v488 = vmax.f32 %v427, 0.0
    %v489 = vmax.f32 %v429, 0.0
    %v490 = vmax.f32 %v437, 0.0
    %v491 = vmax.f32 %v445, 0.0
    %v492 = vmax.f32 %v444, 0.0
    %v493 = vmax.f32 %v446, 0.0
    %v494 = vmax.f32 %v454, 0.0
    %v495 = vmax.f32 %v462, 0.0
    %v496 = vmax.f32 %v461, 0.0
    %v497 = vmax.f32 %v463, 0.0
    %v498 = vmax.f32 %v470, 0.0
    %v499 = vmax.f32 %v471, 0.0
    %v514 = vcombine.low %v486, %v487
    %v515 = vcombine.low %v488, %v489
    %v517 = vunpack.c.l.s4 1983009808
    %v518 = vunpack.c.0.s8 %v517
    %v519 = vlaneseq
    %v520 = vshrl.u32 %v519, 7
    %v521 = vsub.s32 %v518, %v520
    %v522 = vrot.slane %v514, %v521
    %v524 = vunpack.c.l.s4 1983009808
    %v525 = vunpack.c.0.s8 %v524
    %v526 = vlaneseq
    %v527 = vshrl.u32 %v526, 7
    %v528 = vsub.s32 %v525, %v527
    %v529 = vrot.slane %v515, %v528
    %v530 = vcombine.low %v522, %v529
    %v531 = vcombine.low %v490, %v491
    %v533 = vunpack.c.l.s4 1983009808
    %v534 = vunpack.c.0.s8 %v533
    %v535 = vlaneseq
    %v536 = vshrl.u32 %v535, 7
    %v537 = vsub.s32 %v534, %v536
    %v538 = vrot.slane %v531, %v537
    %v540 = vunpack.c.l.s4 1983009808
    %v541 = vunpack.c.0.s8 %v540
    %v542 = vlaneseq
    %v543 = vshrl.u32 %v542, 7
    %v544 = vsub.s32 %v541, %v543
    %v545 = vrot.slane %v492, %v544
    %v546 = vcombine.low %v538, %v545
    %v547 = vcombine.low %v493, %v494
    %v548 = vcombine.low %v495, %v496
    %v550 = vunpack.c.l.s4 1983009808
    %v551 = vunpack.c.0.s8 %v550
    %v552 = vlaneseq
    %v553 = vshrl.u32 %v552, 7
    %v554 = vsub.s32 %v551, %v553
    %v555 = vrot.slane %v547, %v554
    %v557 = vunpack.c.l.s4 1983009808
    %v558 = vunpack.c.0.s8 %v557
    %v559 = vlaneseq
    %v560 = vshrl.u32 %v559, 7
    %v561 = vsub.s32 %v558, %v560
    %v562 = vrot.slane %v548, %v561
    %v563 = vcombine.low %v555, %v562
    %v564 = vcombine.low %v497, %v498
    %v566 = vunpack.c.l.s4 1983009808
    %v567 = vunpack.c.0.s8 %v566
    %v568 = vlaneseq
    %v569 = vshrl.u32 %v568, 7
    %v570 = vsub.s32 %v567, %v569
    %v571 = vrot.slane %v564, %v570
    %v573 = vunpack.c.l.s4 1983009808
    %v574 = vunpack.c.0.s8 %v573
    %v575 = vlaneseq
    %v576 = vshrl.u32 %v575, 7
    %v577 = vsub.s32 %v574, %v576
    %v578 = vrot.slane %v499, %v577
    %v579 = vcombine.low %v571, %v578
    %v584 = vsel %vm108, %v530, 0.0
    %v585 = vsel %vm108, %v563, 0.0
    %v586 = vadd.f32 %v584, %v585
    %vm587 = vcmask 62464
    %v588 = vsel %vm587, %v546, 0.0
    %v589 = vsel %vm587, %v579, 0.0
    %v590 = vadd.f32 %v588, %v589
    %v591 = vsel %vm108, %v586, 0.0
    %v592 = vsel %vm587, %v590, 0.0
    %v593 = vadd.f32 %v591, %v592
    %v594 = vrot.slane %v593, 4
    %v595 = vadd.f32 %v593, %v594
    %v596 = vrot.slane %v595, 2
    %v597 = vadd.f32 %v595, %v596
    %v598 = vrot.slane %v597, 1
    %v599 = vadd.f32 %v597, %v598
    %v600 = vmul.f32 %v599, 0.035714287
    %v601 = vmul.f32 %v486, %v486
    %v602 = vmul.f32 %v487, %v487
    %v603 = vmul.f32 %v488, %v488
    %v604 = vmul.f32 %v489, %v489
    %v605 = vmul.f32 %v490, %v490
    %v606 = vmul.f32 %v491, %v491
    %v607 = vmul.f32 %v492, %v492
    %v608 = vmul.f32 %v493, %v493
    %v609 = vmul.f32 %v494, %v494
    %v610 = vmul.f32 %v495, %v495
    %v611 = vmul.f32 %v496, %v496
    %v612 = vmul.f32 %v497, %v497
    %v613 = vmul.f32 %v498, %v498
    %v614 = vmul.f32 %v499, %v499
    %v629 = vcombine.low %v601, %v602
    %v630 = vcombine.low %v603, %v604
    %v632 = vunpack.c.l.s4 1983009808
    %v633 = vunpack.c.0.s8 %v632
    %v634 = vlaneseq
    %v635 = vshrl.u32 %v634, 7
    %v636 = vsub.s32 %v633, %v635
    %v637 = vrot.slane %v629, %v636
    %v639 = vunpack.c.l.s4 1983009808
    %v640 = vunpack.c.0.s8 %v639
    %v641 = vlaneseq
    %v642 = vshrl.u32 %v641, 7
    %v643 = vsub.s32 %v640, %v642
    %v644 = vrot.slane %v630, %v643
    %v645 = vcombine.low %v637, %v644
    %v646 = vcombine.low %v605, %v606
    %v648 = vunpack.c.l.s4 1983009808
    %v649 = vunpack.c.0.s8 %v648
    %v650 = vlaneseq
    %v651 = vshrl.u32 %v650, 7
    %v652 = vsub.s32 %v649, %v651
    %v653 = vrot.slane %v646, %v652
    %v655 = vunpack.c.l.s4 1983009808
    %v656 = vunpack.c.0.s8 %v655
    %v657 = vlaneseq
    %v658 = vshrl.u32 %v657, 7
    %v659 = vsub.s32 %v656, %v658
    %v660 = vrot.slane %v607, %v659
    %v661 = vcombine.low %v653, %v660
    %v662 = vcombine.low %v608, %v609
    %v663 = vcombine.low %v610, %v611
    %v665 = vunpack.c.l.s4 1983009808
    %v666 = vunpack.c.0.s8 %v665
    %v667 = vlaneseq
    %v668 = vshrl.u32 %v667, 7
    %v669 = vsub.s32 %v666, %v668
    %v670 = vrot.slane %v662, %v669
    %v672 = vunpack.c.l.s4 1983009808
    %v673 = vunpack.c.0.s8 %v672
    %v674 = vlaneseq
    %v675 = vshrl.u32 %v674, 7
    %v676 = vsub.s32 %v673, %v675
    %v677 = vrot.slane %v663, %v676
    %v678 = vcombine.low %v670, %v677
    %v679 = vcombine.low %v612, %v613
    %v681 = vunpack.c.l.s4 1983009808
    %v682 = vunpack.c.0.s8 %v681
    %v683 = vlaneseq
    %v684 = vshrl.u32 %v683, 7
    %v685 = vsub.s32 %v682, %v684
    %v686 = vrot.slane %v679, %v685
    %v688 = vunpack.c.l.s4 1983009808
    %v689 = vunpack.c.0.s8 %v688
    %v690 = vlaneseq
    %v691 = vshrl.u32 %v690, 7
    %v692 = vsub.s32 %v689, %v691
    %v693 = vrot.slane %v614, %v692
    %v694 = vcombine.low %v686, %v693
    %v699 = vsel %vm108, %v645, 0.0
    %v700 = vsel %vm108, %v678, 0.0
    %v701 = vadd.f32 %v699, %v700
    %v702 = vsel %vm587, %v661, 0.0
    %v703 = vsel %vm587, %v694, 0.0
    %v704 = vadd.f32 %v702, %v703
    %v705 = vsel %vm108, %v701, 0.0
    %v706 = vsel %vm587, %v704, 0.0
    %v707 = vadd.f32 %v705, %v706
    %v708 = vrot.slane %v707, 4
    %v709 = vadd.f32 %v707, %v708
    %v710 = vrot.slane %v709, 2
    %v711 = vadd.f32 %v709, %v710
    %v712 = vrot.slane %v711, 1
    %v713 = vadd.f32 %v711, %v712
    %v714 = vmul.f32 %v713, 0.035714287
    %v715 = vmul.f32 %v600, %v600
    %v716 = vsub.f32 %v714, %v715
    %v718 = vcombine.high %v600, %v600
    %v720 = vunpack.c.l.s4 1983009808
    %v721 = vunpack.c.0.s8 %v720
    %v722 = vlaneseq
    %v723 = vshrl.u32 %v722, 7
    %v724 = vsub.s32 %v721, %v723
    %v725 = vrot.slane %v600, %v724
    %v727 = vunpack.c.l.s4 1983009808
    %v728 = vunpack.c.0.s8 %v727
    %v729 = vlaneseq
    %v730 = vshrl.u32 %v729, 7
    %v731 = vsub.s32 %v728, %v730
    %v732 = vrot.slane %v718, %v731
    %v733 = vcombine.high %v725, %v725
    %v734 = vcombine.high %v732, %v732
    %v739 = vsub.f32 %v486, %v725
    %v740 = vsub.f32 %v487, %v733
    %v741 = vsub.f32 %v488, %v732
    %v742 = vsub.f32 %v489, %v734
    %v743 = vsub.f32 %v490, %v725
    %v744 = vsub.f32 %v491, %v733
    %v745 = vsub.f32 %v492, %v732
    %v746 = vsub.f32 %v493, %v725
    %v747 = vsub.f32 %v494, %v733
    %v748 = vsub.f32 %v495, %v732
    %v749 = vsub.f32 %v496, %v734
    %v750 = vsub.f32 %v497, %v725
    %v751 = vsub.f32 %v498, %v733
    %v752 = vsub.f32 %v499, %v732
    %v753 = vadd.f32 %v716, 1e-05
    %v754 = vrsqrt.pop %v753
    %v756 = vcombine.high %v754, %v754
    %v758 = vunpack.c.l.s4 1983009808
    %v759 = vunpack.c.0.s8 %v758
    %v760 = vlaneseq
    %v761 = vshrl.u32 %v760, 7
    %v762 = vsub.s32 %v759, %v761
    %v763 = vrot.slane %v754, %v762
    %v765 = vunpack.c.l.s4 1983009808
    %v766 = vunpack.c.0.s8 %v765
    %v767 = vlaneseq
    %v768 = vshrl.u32 %v767, 7
    %v769 = vsub.s32 %v766, %v768
    %v770 = vrot.slane %v756, %v769
    %v771 = vcombine.high %v763, %v763
    %v772 = vcombine.high %v770, %v770
    %v777 = vmul.f32 %v739, %v763
    %v778 = vmul.f32 %v740, %v771
    %v779 = vmul.f32 %v741, %v770
    %v780 = vmul.f32 %v742, %v772
    %v781 = vmul.f32 %v743, %v763
    %v782 = vmul.f32 %v744, %v771
    %v783 = vmul.f32 %v745, %v770
    %v784 = vmul.f32 %v746, %v763
    %v785 = vmul.f32 %v747, %v771
    %v786 = vmul.f32 %v748, %v770
    %v787 = vmul.f32 %v749, %v772
    %v788 = vmul.f32 %v750, %v763
    %v789 = vmul.f32 %v751, %v771
    %v790 = vmul.f32 %v752, %v770
    %v791 = vlaneseq
    %v792 = vshrl.u32 %v791, 7
    %v793 = vsub.s32 0, %v792
    %v794 = vrot.slane %v59, %v793
    %v796 = vcombine.high %v794, %v794
    %v798 = vunpack.c.l.s4 1983009808
    %v799 = vunpack.c.0.s8 %v798
    %v800 = vlaneseq
    %v801 = vshrl.u32 %v800, 7
    %v802 = vsub.s32 %v799, %v801
    %v803 = vrot.slane %v794, %v802
    %v805 = vunpack.c.l.s4 1983009808
    %v806 = vunpack.c.0.s8 %v805
    %v807 = vlaneseq
    %v808 = vshrl.u32 %v807, 7
    %v809 = vsub.s32 %v806, %v808
    %v810 = vrot.slane %v796, %v809
    %v811 = vcombine.high %v803, %v803
    %v812 = vcombine.high %v810, %v810
    %v817 = vmul.f32 %v777, %v803
    %v818 = vmul.f32 %v778, %v811
    %v819 = vmul.f32 %v779, %v810
    %v820 = vmul.f32 %v780, %v812
    %v821 = vmul.f32 %v781, %v803
    %v822 = vmul.f32 %v782, %v811
    %v823 = vmul.f32 %v783, %v810
    %v824 = vmul.f32 %v784, %v803
    %v825 = vmul.f32 %v785, %v811
    %v826 = vmul.f32 %v786, %v810
    %v827 = vmul.f32 %v787, %v812
    %v828 = vmul.f32 %v788, %v803
    %v829 = vmul.f32 %v789, %v811
    %v830 = vmul.f32 %v790, %v810
    %v831 = vlaneseq
    %v832 = vshrl.u32 %v831, 7
    %v833 = vsub.s32 0, %v832
    %v834 = vrot.slane %v60, %v833
    %v836 = vcombine.high %v834, %v834
    %v838 = vunpack.c.l.s4 1983009808
    %v839 = vunpack.c.0.s8 %v838
    %v840 = vlaneseq
    %v841 = vshrl.u32 %v840, 7
    %v842 = vsub.s32 %v839, %v841
    %v843 = vrot.slane %v834, %v842
    %v845 = vunpack.c.l.s4 1983009808
    %v846 = vunpack.c.0.s8 %v845
    %v847 = vlaneseq
    %v848 = vshrl.u32 %v847, 7
    %v849 = vsub.s32 %v846, %v848
    %v850 = vrot.slane %v836, %v849
    %v851 = vcombine.high %v843, %v843
    %v852 = vcombine.high %v850, %v850
    %v857 = vadd.f32 %v817, %v843
    %v858 = vadd.f32 %v818, %v851
    %v859 = vadd.f32 %v819, %v850
    %v860 = vadd.f32 %v820, %v852
    %v861 = vadd.f32 %v821, %v843
    %v862 = vadd.f32 %v822, %v851
    %v863 = vadd.f32 %v823, %v850
    %v864 = vadd.f32 %v824, %v843
    %v865 = vadd.f32 %v825, %v851
    %v866 = vadd.f32 %v826, %v850
    %v867 = vadd.f32 %v827, %v852
    %v868 = vadd.f32 %v828, %v843
    %v869 = vadd.f32 %v829, %v851
    %v870 = vadd.f32 %v830, %v850
    %v871 = vld [vmem:[#allocation2 + $0xeb] sm:$0x1]
    %v872 = vld [vmem:[#allocation2 + $0xec] sm:$0x1]
    %v873 = vld [vmem:[#allocation2 + $0xed] sm:$0x1]
    %v886 = vcombine.low %v857, %v858
    %v887 = vcombine.low %v859, %v860
    %v889 = vunpack.c.l.s4 1983009808
    %v890 = vunpack.c.0.s8 %v889
    %v891 = vlaneseq
    %v892 = vshrl.u32 %v891, 7
    %v893 = vsub.s32 %v890, %v892
    %v894 = vrot.slane %v886, %v893
    %v896 = vunpack.c.l.s4 1983009808
    %v897 = vunpack.c.0.s8 %v896
    %v898 = vlaneseq
    %v899 = vshrl.u32 %v898, 7
    %v900 = vsub.s32 %v897, %v899
    %v901 = vrot.slane %v887, %v900
    %v902 = vcombine.low %v894, %v901
    %v903 = vcombine.low %v861, %v862
    %v905 = vunpack.c.l.s4 1983009808
    %v906 = vunpack.c.0.s8 %v905
    %v907 = vlaneseq
    %v908 = vshrl.u32 %v907, 7
    %v909 = vsub.s32 %v906, %v908
    %v910 = vrot.slane %v903, %v909
    %v911 = vcombine.low %v864, %v865
    %v912 = vcombine.low %v866, %v867
    %v914 = vunpack.c.l.s4 1983009808
    %v915 = vunpack.c.0.s8 %v914
    %v916 = vlaneseq
    %v917 = vshrl.u32 %v916, 7
    %v918 = vsub.s32 %v915, %v917
    %v919 = vrot.slane %v911, %v918
    %v921 = vunpack.c.l.s4 1983009808
    %v922 = vunpack.c.0.s8 %v921
    %v923 = vlaneseq
    %v924 = vshrl.u32 %v923, 7
    %v925 = vsub.s32 %v922, %v924
    %v926 = vrot.slane %v912, %v925
    %v927 = vcombine.low %v919, %v926
    %v928 = vcombine.low %v868, %v869
    %v930 = vunpack.c.l.s4 1983009808
    %v931 = vunpack.c.0.s8 %v930
    %v932 = vlaneseq
    %v933 = vshrl.u32 %v932, 7
    %v934 = vsub.s32 %v931, %v933
    %v935 = vrot.slane %v928, %v934
    %v943 = vunpack.c.l.s4 1983009808
    %v944 = vunpack.c.0.s8 %v943
    %v945 = vlaneseq
    %v946 = vshrl.u32 %v945, 7
    %v947 = vsub.s32 %v944, %v946
    %v948 = vrot.slane %v863, %v947
    %v949 = vcombine.low %v910, %v948
    %v951 = vunpack.c.l.s4 1983009808
    %v952 = vunpack.c.0.s8 %v951
    %v953 = vlaneseq
    %v954 = vshrl.u32 %v953, 7
    %v955 = vsub.s32 %v952, %v954
    %v956 = vrot.slane %v870, %v955
    %v957 = vcombine.low %v935, %v956
    %v958 = vrot.slane %v902, 1
    %v959 = vrot.slane %v949, 1
    %v960 = vsel %vm65, %v958, %v959
    %v961 = vrot.slane %v927, 1
    %v962 = vrot.slane %v957, 1
    %v963 = vsel %vm65, %v961, %v962
    %964 = vrot.lane.b32.xlu0 %v960, 8
    %v965 = vpop.permute.xlu0 %964
    %966 = vrot.lane.b32.xlu0 %v959, 8
    %v967 = vpop.permute.xlu0 %966
    %968 = vrot.lane.b32.xlu0 %v963, 8
    %v969 = vpop.permute.xlu0 %968
    %970 = vrot.lane.b32.xlu0 %v962, 8
    %v971 = vpop.permute.xlu0 %970
    %v976 = vcombine.low %v858, %v859
    %v977 = vcombine.low %v860, %v861
    %v979 = vunpack.c.l.s4 1983009808
    %v980 = vunpack.c.0.s8 %v979
    %v981 = vlaneseq
    %v982 = vshrl.u32 %v981, 7
    %v983 = vsub.s32 %v980, %v982
    %v984 = vrot.slane %v976, %v983
    %v986 = vunpack.c.l.s4 1983009808
    %v987 = vunpack.c.0.s8 %v986
    %v988 = vlaneseq
    %v989 = vshrl.u32 %v988, 7
    %v990 = vsub.s32 %v987, %v989
    %v991 = vrot.slane %v977, %v990
    %v992 = vcombine.low %v984, %v991
    %v993 = vcombine.low %v862, %v863
    %v995 = vunpack.c.l.s4 1983009808
    %v996 = vunpack.c.0.s8 %v995
    %v997 = vlaneseq
    %v998 = vshrl.u32 %v997, 7
    %v999 = vsub.s32 %v996, %v998
    %v1000 = vrot.slane %v993, %v999
    %v1001 = vcombine.low %v865, %v866
    %v1002 = vcombine.low %v867, %v868
    %v1004 = vunpack.c.l.s4 1983009808
    %v1005 = vunpack.c.0.s8 %v1004
    %v1006 = vlaneseq
    %v1007 = vshrl.u32 %v1006, 7
    %v1008 = vsub.s32 %v1005, %v1007
    %v1009 = vrot.slane %v1001, %v1008
    %v1011 = vunpack.c.l.s4 1983009808
    %v1012 = vunpack.c.0.s8 %v1011
    %v1013 = vlaneseq
    %v1014 = vshrl.u32 %v1013, 7
    %v1015 = vsub.s32 %v1012, %v1014
    %v1016 = vrot.slane %v1002, %v1015
    %v1017 = vcombine.low %v1009, %v1016
    %v1018 = vcombine.low %v869, %v870
    %v1020 = vunpack.c.l.s4 1983009808
    %v1021 = vunpack.c.0.s8 %v1020
    %v1022 = vlaneseq
    %v1023 = vshrl.u32 %v1022, 7
    %v1024 = vsub.s32 %v1021, %v1023
    %v1025 = vrot.slane %v1018, %v1024
    %1026 = vrot.lane.b32.xlu0 %v992, 16
    %v1027 = vpop.permute.xlu0 %1026
    %1028 = vrot.lane.b32.xlu0 %v1000, 16
    %v1029 = vpop.permute.xlu0 %1028
    %1030 = vrot.lane.b32.xlu0 %v1017, 16
    %v1031 = vpop.permute.xlu0 %1030
    %1032 = vrot.lane.b32.xlu0 %v1025, 16
    %v1033 = vpop.permute.xlu0 %1032
    %v1038 = vsel %vm108, %v902, %v965
    %v1039 = vsel %vm108, %v910, %v967
    %v1040 = vsel %vm108, %v927, %v969
    %v1041 = vsel %vm108, %v935, %v971
    %vm1042 = vcmask 130048
    %v1043 = vsel %vm1042, %v1038, %v1027
    %v1044 = vsel %vm1042, %v1039, %v1029
    %v1045 = vsel %vm1042, %v1040, %v1031
    %v1046 = vsel %vm1042, %v1041, %v1033
    %v1047 = vlaneseq
    %v1048 = vshrl.u32 %v1047, 7
    %v1049 = vsub.s32 0, %v1048
    %v1050 = vrot.slane %v871, %v1049
    %v1055 = vcombine.high %v1043, %v1043
    %v1056 = vcombine.high %v1045, %v1045
    %v1058 = vcombine.high %v1050, %v1050
    %v1059 = vcombine.low %v1043, %v1055
    %v1060 = vcombine.low %v1044, %v1045
    %v1061 = vcombine.low %v1056, %v1046
    %v1062 = vcombine.low %v1050, %v1058
    %v1063 = vcombine.low %v1050, %v1050
    %v1064 = vcombine.low %v1058, %v1050
    %vm1068 = vcmask 195584
    %v1069 = vsel %vm1068, %v1059, 0
    %v1071 = vsel %vm1068, %v1060, 0
    %v1073 = vsel %vm1068, %v1061, 0
    %1075 = vmatprep.subr.mxu0 0.0
    %1076 = vmatpush1.msra.mxu0 0.0
    %1077 = vmatprep.subr.mxu0 0.0
    %1078 = vmatpush1.msra.mxu0 0.0
    %1079 = vmatprep.subr.mxu0 0.0
    %1080 = vmatpush1.msra.mxu0 0.0
    %1081 = vmatprep.subr.mxu0 0.0
    %1082 = vmatpush1.msra.mxu0 0.0
    %1083 = vmatprep.subr.mxu0 0.0
    %1084 = vmatpush1.msra.mxu0 0.0
    %1085 = vmatprep.subr.mxu0 0.0
    %1086 = vmatpush1.msra.mxu0 0.0
    %1087 = vmatprep.subr.mxu0 0.0
    %1088 = vmatpush1.msra.mxu0 0.0
    %1089 = vmatprep.subr.mxu0 0.0
    %1090 = vmatpush1.msra.mxu0 0.0
    %1091 = vmatprep.subr.mxu0 0.0
    %1092 = vmatpush1.msra.mxu0 0.0
    %1093 = vmatprep.subr.mxu0 0.0
    %1094 = vmatpush1.msra.mxu0 0.0
    %1095 = vmatprep.subr.mxu0 0.0
    %1096 = vmatpush1.msra.mxu0 0.0
    %1097 = vmatprep.subr.mxu0 0.0
    %1098 = vmatpush1.msra.mxu0 0.0
    %1099 = vmatprep.subr.mxu0 0.0
    %1100 = vmatpush1.msra.mxu0 0.0
    %1101 = vmatprep.subr.mxu0 0.0
    %1102 = vmatpush1.msra.mxu0 %v33
    %1103 = vmatprep.subr.mxu0 0.0
    %1104 = vmatpush1.msra.mxu0 %v32
    %1105 = vmatprep.subr.mxu0 0.0
    %1106 = vmatpush1.msra.mxu0 %v31
    %1107 = vmatprep.subr.mxu0 0.0
    %1108 = vmatpush2.msra.mxu0 0.0
    %1109 = vmatprep.subr.mxu0 0.0
    %1110 = vmatpush2.msra.mxu0 0.0
    %1111 = vmatprep.subr.mxu0 0.0
    %1112 = vmatpush2.msra.mxu0 0.0
    %1113 = vmatprep.subr.mxu0 0.0
    %1114 = vmatpush2.msra.mxu0 0.0
    %1115 = vmatprep.subr.mxu0 0.0
    %1116 = vmatpush2.msra.mxu0 0.0
    %1117 = vmatprep.subr.mxu0 0.0
    %1118 = vmatpush2.msra.mxu0 0.0
    %1119 = vmatprep.subr.mxu0 0.0
    %1120 = vmatpush2.msra.mxu0 0.0
    %1121 = vmatprep.subr.mxu0 0.0
    %1122 = vmatpush2.msra.mxu0 0.0
    %1123 = vmatprep.subr.mxu0 0.0
    %1124 = vmatpush2.msra.mxu0 0.0
    %1125 = vmatprep.subr.mxu0 0.0
    %1126 = vmatpush2.msra.mxu0 0.0
    %1127 = vmatprep.subr.mxu0 0.0
    %1128 = vmatpush2.msra.mxu0 0.0
    %1129 = vmatprep.subr.mxu0 0.0
    %1130 = vmatpush2.msra.mxu0 0.0
    %1131 = vmatprep.subr.mxu0 0.0
    %1132 = vmatpush2.msra.mxu0 0.0
    %1133 = vmatprep.subr.mxu0 0.0
    %1134 = vmatpush2.msra.mxu0 0.0
    %1135 = vmatprep.subr.mxu0 0.0
    %1136 = vmatpush2.msra.mxu0 0.0
    %1137 = vmatprep.subr.mxu0 0.0
    %1138 = vmatpush2.msra.mxu0 0.0
    %1139 = vmatprep.mubr.f32.mxu0 0.0
    %1140 = vmatmul.mubr.f32.gmra.mxu0 %v1069
    %v1141 = vpop.f32.mrf.mxu0
    %v1142 = vadd.f32 %v1062, %v1141
    %v1143 = vpop.f32.mrf.mxu0
    %1144 = vmatprep.mubr.f32.mxu0 0.0
    %1145 = vmatmul.mubr.f32.gmra.mxu0 %v1071
    %v1146 = vpop.f32.mrf.mxu0
    %v1147 = vadd.f32 %v1063, %v1146
    %v1148 = vpop.f32.mrf.mxu0
    %1149 = vmatprep.mubr.f32.mxu0 0.0
    %1150 = vmatmul.mubr.f32.gmra.mxu0 %v1073
    %v1151 = vpop.f32.mrf.mxu0
    %v1152 = vadd.f32 %v1064, %v1151
    %v1153 = vpop.f32.mrf.mxu0
    %1154 = vdwg.mxu0
    %v1158 = vcombine.high %v1142, %v1142
    %v1159 = vcombine.high %v1147, %v1147
    %v1160 = vcombine.high %v1152, %v1152
    %v1164 = vmax.f32 %v1142, 0.0
    %v1165 = vmax.f32 %v1158, 0.0
    %v1166 = vmax.f32 %v1147, 0.0
    %v1167 = vmax.f32 %v1159, 0.0
    %v1168 = vmax.f32 %v1152, 0.0
    %v1169 = vmax.f32 %v1160, 0.0
    %v1174 = vcombine.low %v1164, %v1165
    %v1175 = vcombine.low %v1167, %v1168
    %v1178 = vsel %vm1042, %v1174, 0.0
    %v1179 = vsel %vm1042, %v1175, 0.0
    %v1180 = vadd.f32 %v1178, %v1179
    %vm1181 = vcmask 125952
    %v1182 = vsel %vm1181, %v1166, 0.0
    %v1183 = vsel %vm1181, %v1169, 0.0
    %v1184 = vadd.f32 %v1182, %v1183
    %v1185 = vsel %vm1042, %v1180, 0.0
    %v1186 = vsel %vm1181, %v1184, 0.0
    %v1187 = vadd.f32 %v1185, %v1186
    %v1188 = vrot.slane %v1187, 4
    %v1189 = vadd.f32 %v1187, %v1188
    %v1190 = vrot.slane %v1189, 2
    %v1191 = vadd.f32 %v1189, %v1190
    %v1192 = vrot.slane %v1191, 1
    %v1193 = vadd.f32 %v1191, %v1192
    %v1194 = vmul.f32 %v1193, 0.041666668
    %v1195 = vmul.f32 %v1164, %v1164
    %v1196 = vmul.f32 %v1165, %v1165
    %v1197 = vmul.f32 %v1166, %v1166
    %v1198 = vmul.f32 %v1167, %v1167
    %v1199 = vmul.f32 %v1168, %v1168
    %v1200 = vmul.f32 %v1169, %v1169
    %v1205 = vcombine.low %v1195, %v1196
    %v1206 = vcombine.low %v1198, %v1199
    %v1209 = vsel %vm1042, %v1205, 0.0
    %v1210 = vsel %vm1042, %v1206, 0.0
    %v1211 = vadd.f32 %v1209, %v1210
    %v1212 = vsel %vm1181, %v1197, 0.0
    %v1213 = vsel %vm1181, %v1200, 0.0
    %v1214 = vadd.f32 %v1212, %v1213
    %v1215 = vsel %vm1042, %v1211, 0.0
    %v1216 = vsel %vm1181, %v1214, 0.0
    %v1217 = vadd.f32 %v1215, %v1216
    %v1218 = vrot.slane %v1217, 4
    %v1219 = vadd.f32 %v1217, %v1218
    %v1220 = vrot.slane %v1219, 2
    %v1221 = vadd.f32 %v1219, %v1220
    %v1222 = vrot.slane %v1221, 1
    %v1223 = vadd.f32 %v1221, %v1222
    %v1224 = vmul.f32 %v1223, 0.041666668
    %v1225 = vmul.f32 %v1194, %v1194
    %v1226 = vsub.f32 %v1224, %v1225
    %v1228 = vcombine.high %v1194, %v1194
    %v1230 = vsub.f32 %v1164, %v1194
    %v1231 = vsub.f32 %v1165, %v1228
    %v1232 = vsub.f32 %v1166, %v1194
    %v1233 = vsub.f32 %v1167, %v1194
    %v1234 = vsub.f32 %v1168, %v1228
    %v1235 = vsub.f32 %v1169, %v1194
    %v1236 = vadd.f32 %v1226, 1e-05
    %v1237 = vrsqrt.pop %v1236
    %v1239 = vcombine.high %v1237, %v1237
    %v1241 = vmul.f32 %v1230, %v1237
    %v1242 = vmul.f32 %v1231, %v1239
    %v1243 = vmul.f32 %v1232, %v1237
    %v1244 = vmul.f32 %v1233, %v1237
    %v1245 = vmul.f32 %v1234, %v1239
    %v1246 = vmul.f32 %v1235, %v1237
    %v1247 = vlaneseq
    %v1248 = vshrl.u32 %v1247, 7
    %v1249 = vsub.s32 0, %v1248
    %v1250 = vrot.slane %v872, %v1249
    %v1252 = vcombine.high %v1250, %v1250
    %v1254 = vmul.f32 %v1241, %v1250
    %v1255 = vmul.f32 %v1242, %v1252
    %v1256 = vmul.f32 %v1243, %v1250
    %v1257 = vmul.f32 %v1244, %v1250
    %v1258 = vmul.f32 %v1245, %v1252
    %v1259 = vmul.f32 %v1246, %v1250
    %v1260 = vlaneseq
    %v1261 = vshrl.u32 %v1260, 7
    %v1262 = vsub.s32 0, %v1261
    %v1263 = vrot.slane %v873, %v1262
    %v1265 = vcombine.high %v1263, %v1263
    %v1267 = vadd.f32 %v1254, %v1263
    %v1269 = vunpack.c.l.s4 1983009808
    %v1270 = vunpack.c.0.s8 %v1269
    %v1271 = vlaneseq
    %v1272 = vshrl.u32 %v1271, 7
    %v1273 = vsub.s32 %v1270, %v1272
    %v1274 = vrot.slane %v1267, %v1273
    %v1275 = vadd.f32 %v1257, %v1263
    %v1277 = vunpack.c.l.s4 1983009808
    %v1278 = vunpack.c.0.s8 %v1277
    %v1279 = vlaneseq
    %v1280 = vshrl.u32 %v1279, 7
    %v1281 = vsub.s32 %v1278, %v1280
    %v1282 = vrot.slane %v1275, %v1281
    %v1283 = vcombine.low %v1274, %v1282
    %v1284 = vcombine.high %v1274, %v1282
    %v1286 = vunpack.c.l.s4 1934713408
    %v1287 = vunpack.c.0.s8 %v1286
    %v1288 = vlaneseq
    %v1289 = vshrl.u32 %v1288, 7
    %v1290 = vsub.s32 %v1287, %v1289
    %v1291 = vrot.slane %v1283, %v1290
    %v1293 = vunpack.c.l.s4 1934713408
    %v1294 = vunpack.c.0.s8 %v1293
    %v1295 = vlaneseq
    %v1296 = vshrl.u32 %v1295, 7
    %v1297 = vsub.s32 %v1294, %v1296
    %v1298 = vrot.slane %v1284, %v1297
    %v1299 = vcombine.high %v1291, 0.0
    %v1300 = vcombine.high %v1298, 0.0
    %v1301 = vadd.f32 %v1255, %v1265
    %v1303 = vunpack.c.l.s4 1983009808
    %v1304 = vunpack.c.0.s8 %v1303
    %v1305 = vlaneseq
    %v1306 = vshrl.u32 %v1305, 7
    %v1307 = vsub.s32 %v1304, %v1306
    %v1308 = vrot.slane %v1301, %v1307
    %v1309 = vadd.f32 %v1258, %v1265
    %v1311 = vunpack.c.l.s4 1983009808
    %v1312 = vunpack.c.0.s8 %v1311
    %v1313 = vlaneseq
    %v1314 = vshrl.u32 %v1313, 7
    %v1315 = vsub.s32 %v1312, %v1314
    %v1316 = vrot.slane %v1309, %v1315
    %v1317 = vcombine.low %v1308, %v1316
    %v1318 = vcombine.high %v1308, %v1316
    %v1320 = vunpack.c.l.s4 1934713408
    %v1321 = vunpack.c.0.s8 %v1320
    %v1322 = vlaneseq
    %v1323 = vshrl.u32 %v1322, 7
    %v1324 = vsub.s32 %v1321, %v1323
    %v1325 = vrot.slane %v1317, %v1324
    %v1327 = vunpack.c.l.s4 1934713408
    %v1328 = vunpack.c.0.s8 %v1327
    %v1329 = vlaneseq
    %v1330 = vshrl.u32 %v1329, 7
    %v1331 = vsub.s32 %v1328, %v1330
    %v1332 = vrot.slane %v1318, %v1331
    %v1333 = vcombine.high %v1325, 0.0
    %v1334 = vcombine.high %v1332, 0.0
    %v1335 = vadd.f32 %v1256, %v1263
    %v1337 = vunpack.c.l.s4 1983009808
    %v1338 = vunpack.c.0.s8 %v1337
    %v1339 = vlaneseq
    %v1340 = vshrl.u32 %v1339, 7
    %v1341 = vsub.s32 %v1338, %v1340
    %v1342 = vrot.slane %v1335, %v1341
    %v1343 = vadd.f32 %v1259, %v1263
    %v1345 = vunpack.c.l.s4 1983009808
    %v1346 = vunpack.c.0.s8 %v1345
    %v1347 = vlaneseq
    %v1348 = vshrl.u32 %v1347, 7
    %v1349 = vsub.s32 %v1346, %v1348
    %v1350 = vrot.slane %v1343, %v1349
    %v1351 = vcombine.low %v1342, %v1350
    %v1352 = vcombine.high %v1342, %v1350
    %v1354 = vunpack.c.l.s4 1934713408
    %v1355 = vunpack.c.0.s8 %v1354
    %v1356 = vlaneseq
    %v1357 = vshrl.u32 %v1356, 7
    %v1358 = vsub.s32 %v1355, %v1357
    %v1359 = vrot.slane %v1351, %v1358
    %v1361 = vunpack.c.l.s4 1934713408
    %v1362 = vunpack.c.0.s8 %v1361
    %v1363 = vlaneseq
    %v1364 = vshrl.u32 %v1363, 7
    %v1365 = vsub.s32 %v1362, %v1364
    %v1366 = vrot.slane %v1352, %v1365
    %v1367 = vcombine.high %v1359, 0.0
    %v1368 = vcombine.high %v1366, 0.0
    %1370 = vrot.lane.b32.xlu0 %v1299, 16
    %v1371 = vpop.permute.xlu0 %1370
    %1374 = vrot.lane.b32.xlu0 %v1298, 32
    %v1375 = vpop.permute.xlu0 %1374
    %1378 = vrot.lane.b32.xlu0 %v1300, 48
    %v1379 = vpop.permute.xlu0 %1378
    %1382 = vrot.lane.b32.xlu0 %v1325, 64
    %v1383 = vpop.permute.xlu0 %1382
    %1386 = vrot.lane.b32.xlu0 %v1333, 80
    %v1387 = vpop.permute.xlu0 %1386
    %1390 = vrot.lane.b32.xlu0 %v1332, 96
    %v1391 = vpop.permute.xlu0 %1390
    %1394 = vrot.lane.b32.xlu0 %v1334, 112
    %v1395 = vpop.permute.xlu0 %1394
    %1398 = vrot.lane.b32.xlu0 %v1367, 16
    %v1399 = vpop.permute.xlu0 %1398
    %1402 = vrot.lane.b32.xlu0 %v1366, 32
    %v1403 = vpop.permute.xlu0 %1402
    %1406 = vrot.lane.b32.xlu0 %v1368, 48
    %v1407 = vpop.permute.xlu0 %1406
    %v1409 = vsel %vm1042, %v1291, %v1371
    %vm1410 = vcmask 261120
    %v1411 = vsel %vm1410, %v1409, %v1375
    %vm1412 = vcmask 392192
    %v1413 = vsel %vm1412, %v1411, %v1379
    %vm1414 = vcmask 523264
    %v1415 = vsel %vm1414, %v1413, %v1383
    %vm1416 = vcmask 654336
    %v1417 = vsel %vm1416, %v1415, %v1387
    %vm1418 = vcmask 785408
    %v1419 = vsel %vm1418, %v1417, %v1391
    %vm1420 = vcmask 916480
    %v1421 = vsel %vm1420, %v1419, %v1395
    %v1422 = vsel %vm1042, %v1359, %v1399
    %v1423 = vsel %vm1410, %v1422, %v1403
    %v1424 = vsel %vm1412, %v1423, %v1407
    %v1425 = vld [vmem:[#allocation2 + $0xee] sm:$0x1]
    %v1426 = vlaneseq
    %v1427 = vshrl.u32 %v1426, 7
    %v1428 = vsub.s32 0, %v1427
    %v1429 = vrot.slane %v1425, %v1428
    %v1431 = vsel %vm1414, %v1424, 0
    %1433 = vmatprep.subr.mxu0 0.0
    %1434 = vmatpush1.msra.mxu0 %v49
    %1435 = vmatprep.subr.mxu0 0.0
    %1436 = vmatpush1.msra.mxu0 %v48
    %1437 = vmatprep.subr.mxu0 0.0
    %1438 = vmatpush1.msra.mxu0 %v47
    %1439 = vmatprep.subr.mxu0 0.0
    %1440 = vmatpush1.msra.mxu0 %v46
    %1441 = vmatprep.subr.mxu0 0.0
    %1442 = vmatpush1.msra.mxu0 %v45
    %1443 = vmatprep.subr.mxu0 0.0
    %1444 = vmatpush1.msra.mxu0 %v44
    %1445 = vmatprep.subr.mxu0 0.0
    %1446 = vmatpush1.msra.mxu0 %v43
    %1447 = vmatprep.subr.mxu0 0.0
    %1448 = vmatpush1.msra.mxu0 %v42
    %1449 = vmatprep.subr.mxu0 0.0
    %1450 = vmatpush1.msra.mxu0 %v41
    %1451 = vmatprep.subr.mxu0 0.0
    %1452 = vmatpush1.msra.mxu0 %v40
    %1453 = vmatprep.subr.mxu0 0.0
    %1454 = vmatpush1.msra.mxu0 %v39
    %1455 = vmatprep.subr.mxu0 0.0
    %1456 = vmatpush1.msra.mxu0 %v38
    %1457 = vmatprep.subr.mxu0 0.0
    %1458 = vmatpush1.msra.mxu0 %v37
    %1459 = vmatprep.subr.mxu0 0.0
    %1460 = vmatpush1.msra.mxu0 %v36
    %1461 = vmatprep.subr.mxu0 0.0
    %1462 = vmatpush1.msra.mxu0 %v35
    %1463 = vmatprep.subr.mxu0 0.0
    %1464 = vmatpush1.msra.mxu0 %v34
    %1465 = vmatprep.subr.mxu0 0.0
    %1466 = vmatpush2.msra.mxu0 0.0
    %1467 = vmatprep.subr.mxu0 0.0
    %1468 = vmatpush2.msra.mxu0 0.0
    %1469 = vmatprep.subr.mxu0 0.0
    %1470 = vmatpush2.msra.mxu0 0.0
    %1471 = vmatprep.subr.mxu0 0.0
    %1472 = vmatpush2.msra.mxu0 0.0
    %1473 = vmatprep.subr.mxu0 0.0
    %1474 = vmatpush2.msra.mxu0 0.0
    %1475 = vmatprep.subr.mxu0 0.0
    %1476 = vmatpush2.msra.mxu0 0.0
    %1477 = vmatprep.subr.mxu0 0.0
    %1478 = vmatpush2.msra.mxu0 0.0
    %1479 = vmatprep.subr.mxu0 0.0
    %1480 = vmatpush2.msra.mxu0 0.0
    %1481 = vmatprep.subr.mxu0 0.0
    %1482 = vmatpush2.msra.mxu0 %v57
    %1483 = vmatprep.subr.mxu0 0.0
    %1484 = vmatpush2.msra.mxu0 %v56
    %1485 = vmatprep.subr.mxu0 0.0
    %1486 = vmatpush2.msra.mxu0 %v55
    %1487 = vmatprep.subr.mxu0 0.0
    %1488 = vmatpush2.msra.mxu0 %v54
    %1489 = vmatprep.subr.mxu0 0.0
    %1490 = vmatpush2.msra.mxu0 %v53
    %1491 = vmatprep.subr.mxu0 0.0
    %1492 = vmatpush2.msra.mxu0 %v52
    %1493 = vmatprep.subr.mxu0 0.0
    %1494 = vmatpush2.msra.mxu0 %v51
    %1495 = vmatprep.subr.mxu0 0.0
    %1496 = vmatpush2.msra.mxu0 %v50
    %1497 = vmatprep.mubr.f32.mxu0 %v1431
    %1498 = vmatmul.mubr.f32.gmra.mxu0 %v1421
    %v1499 = vpop.f32.mrf.mxu0
    %v1500 = vadd.f32 %v1429, %v1499
    %v1501 = vpop.f32.mrf.mxu0
    %1502 = vdwg.mxu0
    %vm1503 = vcmask 91136
    %1504 = vst.msk [vmem:[%s2] sm:$0x3] %vm1503, %v1500
    // Predicated region
    $region14: #{conv1d_block_forward.1} parent=1 // pred_check
      _
    $region15: #{conv1d_block_forward.1} parent=1 // pred_check_branch
      %1506 = sbr.rel (0) target = $region17
    $region16: #{conv1d_block_forward.1} parent=1 // pred_region
      _
    $region17: #{conv1d_block_forward.1} parent=1 // pred_fallthru
      _
    // Predicated region
    $region18: #{conv1d_block_forward.1} parent=1 // pred_check
      _
    $region19: #{conv1d_block_forward.1} parent=1 // pred_check_branch
      %1508 = sbr.rel (0) target = $region21
    $region20: #{conv1d_block_forward.1} parent=1 // pred_region
      _
    $region21: #{conv1d_block_forward.1} parent=1 // pred_fallthru
      _
    %1509 = vsyncpa [#allocation3], 1

</llo_original>
